<compile_context>
chip_gen: v5e
topology: v5e:2x2
jax: 0.10.0
libtpu: 0.0.40
codegen_flags: <defaults>
</compile_context>

<pallas_src>
import functools

import jax
import jax.numpy as jnp
from jax import lax
from jax.experimental import pallas as pl
from jax.experimental.pallas import tpu as pltpu


def _round_up(x, m):
    return ((x + m - 1) // m) * m


def _pad_to(x, shape):
    """Zero-pad trailing extents of `x` up to `shape` (no-op if already aligned)."""
    if tuple(x.shape) == tuple(shape):
        return x
    pads = [(0, t - s) for s, t in zip(x.shape, shape)]
    return jnp.pad(x, pads)


def _vmem_cap_bytes():
    # 75% of physical VMEM (leaves Mosaic internal-scratch headroom on v7x's 64 MiB,
    # lets v5e/v6e use more than 64 MiB); conservative 48 MiB fallback when the TPU
    # info query is unavailable (e.g. CPU interpret mode).
    try:
        return int(0.75 * pltpu.get_tpu_info().vmem_capacity_bytes)
    except Exception:
        return 48 * 2**20


def _basic_attention_kernel(values_ref, negmask_ref, keys_ref, wt_ref, out_ref):
    v = values_ref[...]        # (Nv_p, Dv_p)   matmul dtype (bf16 by default)
    neg = negmask_ref[...]     # (1,  Nv_p)     f32 additive mask: (1 - m) * -1e30
    k = keys_ref[...]          # (TQ, Dk_p)     matmul dtype
    wt = wt_ref[...]           # (Dk_p, Dv_p)   pre-transposed weight, matmul dtype

    # linear(keys) = keys @ W^T  (weight pre-transposed -> plain MXU dot, f32 accum)
    k_proj = jnp.dot(k, wt, preferred_element_type=jnp.float32)            # (TQ, Dv_p)

    # attn_logits = K_proj @ values^T, contracting the last dims directly (canonical
    # TPU Q.K^T contraction; no transpose of the resident values tile).
    logits = lax.dot_general(
        k_proj.astype(v.dtype), v,
        dimension_numbers=(((1,), (1,)), ((), ())),
        preferred_element_type=jnp.float32)                                 # (TQ, Nv_p)

    # masked softmax over the values axis — all f32; padded Nv lanes carry -1e30.
    masked = logits + neg
    masked = masked - jnp.max(masked, axis=-1, keepdims=True)
    e = jnp.exp(masked)
    probs = e * pl.reciprocal(jnp.sum(e, axis=-1, keepdims=True), approx=True)

    # output = probs @ values
    out = jnp.dot(probs.astype(v.dtype), v, preferred_element_type=jnp.float32)
    out_ref[...] = out.astype(out_ref.dtype)                                # (TQ, Dv_p)


@functools.partial(
    jax.jit,
    static_argnames=("matmul_dtype", "out_dtype", "single_buffer_invariants"))
def _basic_attention_impl(values, values_mask, keys, weight, *,
                          matmul_dtype, out_dtype, single_buffer_invariants):
    B, Nv, Dv = values.shape
    _, Nk, Dk = keys.shape
    out_dtype = jnp.dtype(values.dtype if out_dtype is None else out_dtype)
    mm_dtype = jnp.dtype(matmul_dtype)
    it_mm, it_out = mm_dtype.itemsize, out_dtype.itemsize
    sub = 16 if it_mm == 2 else 8            # sublane pack: bf16 -> 16, f32 -> 8

    # lane-dense padding: feature dims and the values axis to multiples of 128.
    Dv_p, Dk_p, Nv_p = _round_up(Dv, 128), _round_up(Dk, 128), _round_up(Nv, 128)

    vmem_cap = _vmem_cap_bytes()

    # key-row tile: 256 matches the v6e/v7x 2x256^2 MXU; fall back to 128 when Nk is
    # small or the f32 logits tile would eat too much of the VMEM budget.
    if Nk >= 256:
        TQ = 256
    elif Nk >= 128:
        TQ = 128
    else:
        TQ = _round_up(Nk, sub)
    if TQ == 256 and TQ * Nv_p * 4 > vmem_cap // 8:
        TQ = 128
    Nk_p = _round_up(Nk, TQ)

    # Host-side padding (skipped entirely when already aligned).
    values_p = _pad_to(values.astype(mm_dtype), (B, Nv_p, Dv_p))
    keys_p = _pad_to(keys.astype(mm_dtype), (B, Nk_p, Dk_p))
    wt_p = _pad_to(weight.T.astype(mm_dtype), (Dk_p, Dv_p))       # (Dk, Dv) pre-T
    neg = (1.0 - values_mask.astype(jnp.float32)) * -1e30          # (B, Nv) f32
    if Nv_p != Nv:                                                 # padded rows -> p=0
        neg = jnp.pad(neg, ((0, 0), (0, Nv_p - Nv)), constant_values=-1e30)
    neg = neg.reshape(B, 1, Nv_p)

    # Buffering: grid-invariant blocks get a single buffer; values too when large.
    inv_bufs = 1 if single_buffer_invariants else 2
    values_bytes = Nv_p * Dv_p * it_mm
    val_bufs = 1 if (single_buffer_invariants
                     and 2 * values_bytes > vmem_cap // 4) else 2

    block_bytes = (val_bufs * values_bytes
                   + inv_bufs * 8 * Nv_p * 4            # (1, Nv_p) mask pads to 8 sublanes
                   + 2 * TQ * Dk_p * it_mm              # keys, pipelined along key axis
                   + inv_bufs * Dk_p * Dv_p * it_mm     # weight
                   + 2 * TQ * Dv_p * it_out)            # output
    interm_bytes = 2 * TQ * Dv_p * 4 + 3 * TQ * Nv_p * 4   # k_proj/out + logits/e/probs
    vmem_limit = int(min(vmem_cap, max(16 * 2**20, 2 * (block_bytes + interm_bytes))))

    def spec(shape, index_map, bufs):
        if bufs == 1:
            return pl.BlockSpec(shape, index_map, pipeline_mode=pl.Buffered(1))
        return pl.BlockSpec(shape, index_map)

    grid = (B, Nk_p // TQ)
    out_p = pl.pallas_call(
        _basic_attention_kernel,
        out_shape=jax.ShapeDtypeStruct((B, Nk_p, Dv_p), out_dtype),
        grid_spec=pltpu.PrefetchScalarGridSpec(
            num_scalar_prefetch=0,
            grid=grid,
            in_specs=[
                # values: resident across key tiles (index constant in q)
                spec((None, Nv_p, Dv_p), lambda b, q: (b, 0, 0), val_bufs),
                # additive mask: resident across key tiles
                spec((None, 1, Nv_p), lambda b, q: (b, 0, 0), inv_bufs),
                # keys: tiled along the key-row axis
                spec((None, TQ, Dk_p), lambda b, q: (b, q, 0), 2),
                # pre-transposed weight: shared by every grid step
                spec((Dk_p, Dv_p), lambda b, q: (0, 0), inv_bufs),
            ],
            out_specs=pl.BlockSpec((None, TQ, Dv_p), lambda b, q: (b, q, 0)),
        ),
        compiler_params=pltpu.CompilerParams(
            dimension_semantics=("parallel", "parallel"),
            vmem_limit_bytes=vmem_limit),
    )(values_p, neg, keys_p, wt_p)

    return out_p[:, :Nk, :Dv]


def basic_attention(values, values_mask, keys, weight, *,
                    matmul_dtype=jnp.bfloat16, out_dtype=None):
    """BasicAttention forward (eval mode).

    values      : (B, Nv, Dv)  float32
    values_mask : (B, Nv)      1 = real, 0 = pad
    keys        : (B, Nk, Dk)  float32
    weight      : (Dv, Dk)     nn.Linear(Dk, Dv, bias=False).weight
    returns     : (B, Nk, Dv)  out_dtype (default: values.dtype)
    """
    kwargs = dict(matmul_dtype=matmul_dtype, out_dtype=out_dtype)
    try:
        out = _basic_attention_impl(values, values_mask, keys, weight,
                                    single_buffer_invariants=True, **kwargs)
        return jax.block_until_ready(out)
    except Exception:
        # Fallback if this backend / interpreter rejects pipeline_mode=pl.Buffered(1)
        # on the grid-invariant blocks (results identical, default double-buffering).
        out = _basic_attention_impl(values, values_mask, keys, weight,
                                    single_buffer_invariants=False, **kwargs)
        return jax.block_until_ready(out)


if __name__ == "__main__":
    B, Nv, Nk = 2, 16, 8
    key_vec_size, value_vec_size = 32, 32

    root = jax.random.PRNGKey(0)
    k_v, k_k, k_w, _ = jax.random.split(root, 4)

    values = jax.random.normal(k_v, (B, Nv, value_vec_size), dtype=jnp.float32)
    keys = jax.random.normal(k_k, (B, Nk, key_vec_size), dtype=jnp.float32)

    # values_mask: 1 for real, 0 for pad (pad the tail of each sequence)
    lengths = jnp.array([Nv, Nv - 5], dtype=jnp.int32)
    values_mask = (jnp.arange(Nv)[None, :] < lengths[:, None]).astype(jnp.float32)

    # nn.Linear(key_vec_size, value_vec_size, bias=False) + xavier_normal_:
    # weight shape (value_vec_size, key_vec_size), std = sqrt(2/(fan_in+fan_out))
    xavier_std = (2.0 / (key_vec_size + value_vec_size)) ** 0.5
    weight = xavier_std * jax.random.normal(
        k_w, (value_vec_size, key_vec_size), dtype=jnp.float32)

    add_mask = ((1.0 - values_mask) * -1e30)[:, None, :]

    # ---------- default path: bf16 MXU operands, f32 softmax / accumulation ----------
    out = basic_attention(values, values_mask, keys, weight)
    jax.block_until_ready(out)
    assert out.shape == (B, Nk, value_vec_size)

    # Precision-regime-matched reference: identical bf16 operand casts, f32 accum.
    v_bf = values.astype(jnp.bfloat16)
    k_bf = keys.astype(jnp.bfloat16)
    w_bf = weight.astype(jnp.bfloat16)
    kp_bf = jnp.einsum("bnd,vd->bnv", k_bf, w_bf,
                       preferred_element_type=jnp.float32)
    lg_bf = jnp.einsum("bnv,bmv->bnm", kp_bf.astype(jnp.bfloat16), v_bf,
                       preferred_element_type=jnp.float32)
    pr_bf = jax.nn.softmax(lg_bf + add_mask, axis=2)
    ref_bf = jnp.einsum("bnm,bmv->bnv", pr_bf.astype(jnp.bfloat16), v_bf,
                        preferred_element_type=jnp.float32)
    assert bool(jnp.allclose(out, ref_bf, atol=2e-2, rtol=2e-2)), \
        "bf16 path mismatch vs regime-matched reference"

    # ---------- f32 matmul path: sanity check vs an exact (HIGHEST) reference ----------
    out_f32 = basic_attention(values, values_mask, keys, weight,
                              matmul_dtype=jnp.float32)
    jax.block_until_ready(out_f32)
    P = jax.lax.Precision.HIGHEST
    kp = jnp.einsum("bnd,vd->bnv", keys, weight, precision=P)
    lg = jnp.einsum("bnv,bmv->bnm", kp, values, precision=P)
    pr = jax.nn.softmax(lg + add_mask, axis=2)
    ref = jnp.einsum("bnm,bmv->bnv", pr, values, precision=P)
    # Norm-based bound: robust to whichever f32 MXU-emulation precision the
    # generation / compiler picks for in-kernel f32 matmuls (strict numerical
    # validation is the regime-matched bf16 check above).
    rel = jnp.linalg.norm(out_f32 - ref) / jnp.linalg.norm(ref)
    assert float(rel) < 0.1, f"f32 path sanity check failed (rel err {float(rel):.3e})"

    print("KERNEL_OK")
</pallas_src>

<mosaic_0001>
module attributes {stable_mosaic.version = 11 : i64} {
  func.func @_basic_attention_kernel(%arg0: i32, %arg1: i32, %arg2: memref<1x128x128xbf16, #tpu.memory_space<vmem>>, %arg3: memref<1x1x128xf32, #tpu.memory_space<vmem>>, %arg4: memref<1x16x128xbf16, #tpu.memory_space<vmem>>, %arg5: memref<128x128xbf16, #tpu.memory_space<vmem>>, %arg6: memref<1x16x128xf32, #tpu.memory_space<vmem>>) attributes {dimension_semantics = [#tpu.dimension_semantics<parallel>, #tpu.dimension_semantics<parallel>], iteration_bounds = array<i64: 2, 1>, scalar_prefetch = 0 : i64, scratch_operands = 0 : i64, tpu.core_type = #tpu.core_type<tc>, window_params = [{transform_indices = @transform_0, window_bounds = array<i64: 1, 128, 128>}, {pipeline_mode = #tpu.pipeline_mode<synchronous>, transform_indices = @transform_1, window_bounds = array<i64: 1, 1, 128>}, {transform_indices = @transform_2, window_bounds = array<i64: 1, 16, 128>}, {pipeline_mode = #tpu.pipeline_mode<synchronous>, transform_indices = @transform_3, window_bounds = array<i64: 128, 128>}, {transform_indices = @transform_4, window_bounds = array<i64: 1, 16, 128>}]} {
    %c0 = arith.constant 0 : index
    %c0_0 = arith.constant 0 : index
    %c0_1 = arith.constant 0 : index
    %0 = vector.load %arg2[%c0, %c0_0, %c0_1] : memref<1x128x128xbf16, #tpu.memory_space<vmem>>, vector<1x128x128xbf16>
    %1 = vector.shape_cast %0 : vector<1x128x128xbf16> to vector<128x128xbf16>
    %c0_2 = arith.constant 0 : index
    %c0_3 = arith.constant 0 : index
    %c0_4 = arith.constant 0 : index
    %2 = vector.load %arg3[%c0_2, %c0_3, %c0_4] : memref<1x1x128xf32, #tpu.memory_space<vmem>>, vector<1x1x128xf32>
    %3 = vector.shape_cast %2 : vector<1x1x128xf32> to vector<1x128xf32>
    %c0_5 = arith.constant 0 : index
    %c0_6 = arith.constant 0 : index
    %c0_7 = arith.constant 0 : index
    %4 = vector.load %arg4[%c0_5, %c0_6, %c0_7] : memref<1x16x128xbf16, #tpu.memory_space<vmem>>, vector<1x16x128xbf16>
    %5 = vector.shape_cast %4 : vector<1x16x128xbf16> to vector<16x128xbf16>
    %c0_8 = arith.constant 0 : index
    %c0_9 = arith.constant 0 : index
    %6 = vector.load %arg5[%c0_8, %c0_9] : memref<128x128xbf16, #tpu.memory_space<vmem>>, vector<128x128xbf16>
    %cst = arith.constant dense<0.000000e+00> : vector<16x128xf32>
    %7 = tpu.matmul %5, %6, %cst {dimension_numbers = #tpu.dot_dimension_numbers<[1], [0], [0], [1], [0, 0, 1, 1], [], []>} : vector<16x128xbf16>, vector<128x128xbf16>, vector<16x128xf32> -> vector<16x128xf32>
    %8 = arith.truncf %7 : vector<16x128xf32> to vector<16x128xbf16>
    %cst_10 = arith.constant dense<0.000000e+00> : vector<16x128xf32>
    %9 = tpu.matmul %8, %1, %cst_10 {dimension_numbers = #tpu.dot_dimension_numbers<[1], [1], [0], [0], [0, 0, 1, 0], [], []>} : vector<16x128xbf16>, vector<128x128xbf16>, vector<16x128xf32> -> vector<16x128xf32>
    %10 = vector.broadcast %3 : vector<1x128xf32> to vector<16x128xf32>
    %11 = arith.addf %9, %10 : vector<16x128xf32>
    %cst_11 = arith.constant dense<0xFF800000> : vector<16xf32>
    %12 = vector.multi_reduction <maximumf>, %11, %cst_11 [1] : vector<16x128xf32> to vector<16xf32>
    %13 = vector.shape_cast %12 : vector<16xf32> to vector<16x1xf32>
    %14 = vector.broadcast %13 : vector<16x1xf32> to vector<16x128xf32>
    %15 = arith.subf %11, %14 : vector<16x128xf32>
    %16 = math.exp %15 : vector<16x128xf32>
    %cst_12 = arith.constant dense<0.000000e+00> : vector<16xf32>
    %17 = vector.multi_reduction <add>, %16, %cst_12 [1] : vector<16x128xf32> to vector<16xf32>
    %18 = vector.shape_cast %17 : vector<16xf32> to vector<16x1xf32>
    %19 = tpu.reciprocal %18 {approx = true} : vector<16x1xf32> -> vector<16x1xf32>
    %20 = vector.broadcast %19 : vector<16x1xf32> to vector<16x128xf32>
    %21 = arith.mulf %16, %20 : vector<16x128xf32>
    %22 = arith.truncf %21 : vector<16x128xf32> to vector<16x128xbf16>
    %cst_13 = arith.constant dense<0.000000e+00> : vector<16x128xf32>
    %23 = tpu.matmul %22, %1, %cst_13 {dimension_numbers = #tpu.dot_dimension_numbers<[1], [0], [0], [1], [0, 0, 1, 1], [], []>} : vector<16x128xbf16>, vector<128x128xbf16>, vector<16x128xf32> -> vector<16x128xf32>
    %c0_14 = arith.constant 0 : index
    %c0_15 = arith.constant 0 : index
    %c0_16 = arith.constant 0 : index
    %24 = vector.load %arg6[%c0_14, %c0_15, %c0_16] : memref<1x16x128xf32, #tpu.memory_space<vmem>>, vector<1x16x128xf32>
    %25 = vector.shape_cast %24 : vector<1x16x128xf32> to vector<16x128xf32>
    %26 = vector.shape_cast %23 : vector<16x128xf32> to vector<1x16x128xf32>
    tpu.vector_store %arg6[%c0_14, %c0_15, %c0_16], %26 {strides = array<i32>} : memref<1x16x128xf32, #tpu.memory_space<vmem>>, vector<1x16x128xf32>,
    return
  }
  func.func @transform_0(%arg0: i32, %arg1: i32) -> (i32, i32, i32) {
    %c0_i32 = arith.constant 0 : i32
    %c0_i32_0 = arith.constant 0 : i32
    %c0_i32_1 = arith.constant 0 : i32
    return %arg0, %c0_i32, %c0_i32_0 : i32, i32, i32
  }
  func.func @transform_1(%arg0: i32, %arg1: i32) -> (i32, i32, i32) {
    %c0_i32 = arith.constant 0 : i32
    %c0_i32_0 = arith.constant 0 : i32
    %c0_i32_1 = arith.constant 0 : i32
    return %arg0, %c0_i32, %c0_i32_0 : i32, i32, i32
  }
  func.func @transform_2(%arg0: i32, %arg1: i32) -> (i32, i32, i32) {
    %c0_i32 = arith.constant 0 : i32
    %c0_i32_0 = arith.constant 0 : i32
    return %arg0, %arg1, %c0_i32 : i32, i32, i32
  }
  func.func @transform_3(%arg0: i32, %arg1: i32) -> (i32, i32) {
    %c0_i32 = arith.constant 0 : i32
    %c0_i32_0 = arith.constant 0 : i32
    %c0_i32_1 = arith.constant 0 : i32
    return %c0_i32, %c0_i32_0 : i32, i32
  }
  func.func @transform_4(%arg0: i32, %arg1: i32) -> (i32, i32, i32) {
    %c0_i32 = arith.constant 0 : i32
    %c0_i32_0 = arith.constant 0 : i32
    return %arg0, %arg1, %c0_i32 : i32, i32, i32
  }
}

module attributes {stable_mosaic.version = 11 : i64} {
  func.func @_basic_attention_kernel(%arg0: i32, %arg1: i32, %arg2: memref<1x128x128xbf16, #tpu.memory_space<vmem>>, %arg3: memref<1x1x128xf32, #tpu.memory_space<vmem>>, %arg4: memref<1x16x128xbf16, #tpu.memory_space<vmem>>, %arg5: memref<128x128xbf16, #tpu.memory_space<vmem>>, %arg6: memref<1x16x128xf32, #tpu.memory_space<vmem>>) attributes {dimension_semantics = [#tpu.dimension_semantics<parallel>, #tpu.dimension_semantics<parallel>], iteration_bounds = array<i64: 2, 1>, scalar_prefetch = 0 : i64, scratch_operands = 0 : i64, tpu.core_type = #tpu.core_type<tc>, window_params = [{transform_indices = @transform_0, window_bounds = array<i64: 1, 128, 128>}, {transform_indices = @transform_1, window_bounds = array<i64: 1, 1, 128>}, {transform_indices = @transform_2, window_bounds = array<i64: 1, 16, 128>}, {pipeline_mode = #tpu.pipeline_mode<synchronous>, transform_indices = @transform_3, window_bounds = array<i64: 128, 128>}, {transform_indices = @transform_4, window_bounds = array<i64: 1, 16, 128>}]} {
    %c0 = arith.constant 0 : index
    %c0_0 = arith.constant 0 : index
    %c0_1 = arith.constant 0 : index
    %0 = vector.load %arg2[%c0, %c0_0, %c0_1] : memref<1x128x128xbf16, #tpu.memory_space<vmem>>, vector<1x128x128xbf16>
    %1 = vector.shape_cast %0 : vector<1x128x128xbf16> to vector<128x128xbf16>
    %c0_2 = arith.constant 0 : index
    %c0_3 = arith.constant 0 : index
    %c0_4 = arith.constant 0 : index
    %2 = vector.load %arg3[%c0_2, %c0_3, %c0_4] : memref<1x1x128xf32, #tpu.memory_space<vmem>>, vector<1x1x128xf32>
    %3 = vector.shape_cast %2 : vector<1x1x128xf32> to vector<1x128xf32>
    %c0_5 = arith.constant 0 : index
    %c0_6 = arith.constant 0 : index
    %c0_7 = arith.constant 0 : index
    %4 = vector.load %arg4[%c0_5, %c0_6, %c0_7] : memref<1x16x128xbf16, #tpu.memory_space<vmem>>, vector<1x16x128xbf16>
    %5 = vector.shape_cast %4 : vector<1x16x128xbf16> to vector<16x128xbf16>
    %c0_8 = arith.constant 0 : index
    %c0_9 = arith.constant 0 : index
    %6 = vector.load %arg5[%c0_8, %c0_9] : memref<128x128xbf16, #tpu.memory_space<vmem>>, vector<128x128xbf16>
    %cst = arith.constant dense<0.000000e+00> : vector<16x128xf32>
    %7 = tpu.matmul %5, %6, %cst {dimension_numbers = #tpu.dot_dimension_numbers<[1], [0], [0], [1], [0, 0, 1, 1], [], []>} : vector<16x128xbf16>, vector<128x128xbf16>, vector<16x128xf32> -> vector<16x128xf32>
    %8 = arith.truncf %7 : vector<16x128xf32> to vector<16x128xbf16>
    %cst_10 = arith.constant dense<0.000000e+00> : vector<16x128xf32>
    %9 = tpu.matmul %8, %1, %cst_10 {dimension_numbers = #tpu.dot_dimension_numbers<[1], [1], [0], [0], [0, 0, 1, 0], [], []>} : vector<16x128xbf16>, vector<128x128xbf16>, vector<16x128xf32> -> vector<16x128xf32>
    %10 = vector.broadcast %3 : vector<1x128xf32> to vector<16x128xf32>
    %11 = arith.addf %9, %10 : vector<16x128xf32>
    %cst_11 = arith.constant dense<0xFF800000> : vector<16xf32>
    %12 = vector.multi_reduction <maximumf>, %11, %cst_11 [1] : vector<16x128xf32> to vector<16xf32>
    %13 = vector.shape_cast %12 : vector<16xf32> to vector<16x1xf32>
    %14 = vector.broadcast %13 : vector<16x1xf32> to vector<16x128xf32>
    %15 = arith.subf %11, %14 : vector<16x128xf32>
    %16 = math.exp %15 : vector<16x128xf32>
    %cst_12 = arith.constant dense<0.000000e+00> : vector<16xf32>
    %17 = vector.multi_reduction <add>, %16, %cst_12 [1] : vector<16x128xf32> to vector<16xf32>
    %18 = vector.shape_cast %17 : vector<16xf32> to vector<16x1xf32>
    %19 = tpu.reciprocal %18 {approx = true} : vector<16x1xf32> -> vector<16x1xf32>
    %20 = vector.broadcast %19 : vector<16x1xf32> to vector<16x128xf32>
    %21 = arith.mulf %16, %20 : vector<16x128xf32>
    %22 = arith.truncf %21 : vector<16x128xf32> to vector<16x128xbf16>
    %cst_13 = arith.constant dense<0.000000e+00> : vector<16x128xf32>
    %23 = tpu.matmul %22, %1, %cst_13 {dimension_numbers = #tpu.dot_dimension_numbers<[1], [0], [0], [1], [0, 0, 1, 1], [], []>} : vector<16x128xbf16>, vector<128x128xbf16>, vector<16x128xf32> -> vector<16x128xf32>
    %c0_14 = arith.constant 0 : index
    %c0_15 = arith.constant 0 : index
    %c0_16 = arith.constant 0 : index
    %24 = vector.load %arg6[%c0_14, %c0_15, %c0_16] : memref<1x16x128xf32, #tpu.memory_space<vmem>>, vector<1x16x128xf32>
    %25 = vector.shape_cast %24 : vector<1x16x128xf32> to vector<16x128xf32>
    %26 = vector.shape_cast %23 : vector<16x128xf32> to vector<1x16x128xf32>
    tpu.vector_store %arg6[%c0_14, %c0_15, %c0_16], %26 {strides = array<i32>} : memref<1x16x128xf32, #tpu.memory_space<vmem>>, vector<1x16x128xf32>,
    return
  }
  func.func @transform_0(%arg0: i32, %arg1: i32) -> (i32, i32, i32) {
    %c0_i32 = arith.constant 0 : i32
    %c0_i32_0 = arith.constant 0 : i32
    %c0_i32_1 = arith.constant 0 : i32
    return %arg0, %c0_i32, %c0_i32_0 : i32, i32, i32
  }
  func.func @transform_1(%arg0: i32, %arg1: i32) -> (i32, i32, i32) {
    %c0_i32 = arith.constant 0 : i32
    %c0_i32_0 = arith.constant 0 : i32
    %c0_i32_1 = arith.constant 0 : i32
    return %arg0, %c0_i32, %c0_i32_0 : i32, i32, i32
  }
  func.func @transform_2(%arg0: i32, %arg1: i32) -> (i32, i32, i32) {
    %c0_i32 = arith.constant 0 : i32
    %c0_i32_0 = arith.constant 0 : i32
    return %arg0, %arg1, %c0_i32 : i32, i32, i32
  }
  func.func @transform_3(%arg0: i32, %arg1: i32) -> (i32, i32) {
    %c0_i32 = arith.constant 0 : i32
    %c0_i32_0 = arith.constant 0 : i32
    %c0_i32_1 = arith.constant 0 : i32
    return %c0_i32, %c0_i32_0 : i32, i32
  }
  func.func @transform_4(%arg0: i32, %arg1: i32) -> (i32, i32, i32) {
    %c0_i32 = arith.constant 0 : i32
    %c0_i32_0 = arith.constant 0 : i32
    return %arg0, %arg1, %c0_i32 : i32, i32, i32
  }
}

</mosaic_0001>

<llo_original>
// kernel: _basic_attention_impl.1
$region0: #{_basic_attention_impl.1}
  #allocation0 [shape = 'u32[]', space=smem, size = 0x4, offset = 0x4, fixed_abs, tag = 'smem constant byte address 0x4 - core index']
  #allocation1 [shape = 'u32[72,128]{1,0:T(1,128)}', space=vmem, size = 0x9000, scoped, tag = 'internal scratch']
  %s0 = inlined_call_operand.vmem [shape: bf16[2,128,128], index: 0, kind: input, shape index: {}]
  %s1 = inlined_call_operand.vmem [shape: f32[2,1,128], index: 1, kind: input, shape index: {}]
  %s2 = inlined_call_operand.vmem [shape: bf16[2,16,128], index: 2, kind: input, shape index: {}]
  %s3 = inlined_call_operand.vmem [shape: bf16[128,128], index: 3, kind: input, shape index: {}]
  %s4 = inlined_call_operand.vmem [shape: f32[2,16,128], index: 4, kind: output, shape index: {}]
  %s5 = sld [smem:[#allocation0]]
  $region49: #{_basic_attention_impl.1} parent=0
    _
  %s7 = ssub.s32 1, %s5
  %s8 = scalar_select 0, %s7, %s5
  loop: start=0, step=1, limit=4
  $region2: #{_basic_attention_impl.1} parent=0 // loop_pre_header
    _
  $region3: #{_basic_attention_impl.1} parent=0 // loop_header
    %s10 = sphi 0, %s14
    %p11 = scmp.ge.s32.totalorder %s10, 4
    %s17 = sphi 0, %s29
    %s18 = sphi 0, %s25
    %s19 = sphi 0, %s17
    %s20 = sphi 0, %s18
    %s21 = sphi 0, %s19
    %s22 = sphi 0, %s20
    %s32 = sphi 0, %s34
    %s35 = sphi 0, %s32
    %s36 = sphi 0, %s35
    %s52 = sphi 0, %s36
    %s58 = sphi 0, %s60
    %s61 = sphi 0, %s58
    %s62 = sphi 0, %s61
    %s78 = sphi 0, %s62
    %s86 = sphi 0, %s88
    %s89 = sphi 0, %s86
    %s90 = sphi 0, %s89
    %s106 = sphi 0, %s90
    %s110 = sphi 0, %s110
    %s112 = sphi 0, %s110
    %s113 = sphi 0, %s112
    %s127 = sphi 0, %s113
    %s135 = sphi 0, %s137
    %s138 = sphi 0, %s135
    %s139 = sphi 0, %s138
    %s155 = sphi 0, %s139
  $region4: #{_basic_attention_impl.1} parent=0 // loop_header_branch
    %13 = sbr.rel (%p11) target = $region8
  $region5: #{_basic_attention_impl.1} parent=0 // loop_body
    %s15 = ssub.s32 %s10, 1
    %s16 = ssub.s32 %s10, 2
    %s23 = sadd.s32 1, %s18
    %p24 = scmp.ge.s32.totalorder %s23, 1
    %s25 = scalar_select %p24, 0, %s23
    %s26 = sadd.s32 1, %s17
    %s27 = scalar_select %p24, %s26, %s17
    %p28 = scmp.ge.s32.totalorder %s27, 2
    %s29 = scalar_select %p28, 0, %s27
    %s30 = ssub.s32 %s17, %s29
    %p31 = scmp.eq.s32.totalorder %s30, 0
    %s33 = sadd.s32 %s32, 1
    %s34 = scalar_select %p31, %s32, %s33
    %p37 = pneg %p31
    %p38 = scmp.eq.s32.totalorder %s10, 1
    %p39 = por %p37, %p38
    %p40 = scmp.ne.s32.totalorder %s32, %s35
    %p41 = scmp.eq.s32.totalorder %s10, 0
    %p42 = por %p40, %p41
    %p43 = scmp.ne.s32.totalorder %s32, %s35
    %p44 = scmp.eq.s32.totalorder %s15, 1
    %p45 = por %p43, %p44
    %p46 = scmp.ne.s32.totalorder %s35, %s36
    %p47 = scmp.eq.s32.totalorder %s15, 0
    %p48 = por %p46, %p47
    %p49 = scmp.ne.s32.totalorder %s35, %s36
    %p50 = scmp.eq.s32.totalorder %s16, 1
    %p51 = por %p49, %p50
    %p53 = scmp.ne.s32.totalorder %s36, %s52
    %p54 = scmp.eq.s32.totalorder %s16, 0
    %p55 = por %p53, %p54
    %s56 = ssub.s32 %s17, %s29
    %p57 = scmp.eq.s32.totalorder %s56, 0
    %s59 = sadd.s32 %s58, 1
    %s60 = scalar_select %p57, %s58, %s59
    %p63 = pneg %p57
    %p64 = scmp.eq.s32.totalorder %s10, 1
    %p65 = por %p63, %p64
    %p66 = scmp.ne.s32.totalorder %s58, %s61
    %p67 = scmp.eq.s32.totalorder %s10, 0
    %p68 = por %p66, %p67
    %p69 = scmp.ne.s32.totalorder %s58, %s61
    %p70 = scmp.eq.s32.totalorder %s15, 1
    %p71 = por %p69, %p70
    %p72 = scmp.ne.s32.totalorder %s61, %s62
    %p73 = scmp.eq.s32.totalorder %s15, 0
    %p74 = por %p72, %p73
    %p75 = scmp.ne.s32.totalorder %s61, %s62
    %p76 = scmp.eq.s32.totalorder %s16, 1
    %p77 = por %p75, %p76
    %p79 = scmp.ne.s32.totalorder %s62, %s78
    %p80 = scmp.eq.s32.totalorder %s16, 0
    %p81 = por %p79, %p80
    %s82 = ssub.s32 %s17, %s29
    %s83 = ssub.s32 %s18, %s25
    %s84 = sor.u32 %s82, %s83
    %p85 = scmp.eq.s32.totalorder %s84, 0
    %s87 = sadd.s32 %s86, 1
    %s88 = scalar_select %p85, %s86, %s87
    %p91 = pneg %p85
    %p92 = scmp.eq.s32.totalorder %s10, 1
    %p93 = por %p91, %p92
    %p94 = scmp.ne.s32.totalorder %s86, %s89
    %p95 = scmp.eq.s32.totalorder %s10, 0
    %p96 = por %p94, %p95
    %p97 = scmp.ne.s32.totalorder %s86, %s89
    %p98 = scmp.eq.s32.totalorder %s15, 1
    %p99 = por %p97, %p98
    %p100 = scmp.ne.s32.totalorder %s89, %s90
    %p101 = scmp.eq.s32.totalorder %s15, 0
    %p102 = por %p100, %p101
    %p103 = scmp.ne.s32.totalorder %s89, %s90
    %p104 = scmp.eq.s32.totalorder %s16, 1
    %p105 = por %p103, %p104
    %p107 = scmp.ne.s32.totalorder %s90, %s106
    %p108 = scmp.eq.s32.totalorder %s16, 0
    %p109 = por %p107, %p108
    %s111 = sadd.s32 %s110, 1
    %p114 = scmp.eq.s32.totalorder %s10, 1
    %p115 = scmp.ne.s32.totalorder %s110, %s112
    %p116 = scmp.eq.s32.totalorder %s10, 0
    %p117 = por %p115, %p116
    %p118 = scmp.ne.s32.totalorder %s110, %s112
    %p119 = scmp.eq.s32.totalorder %s15, 1
    %p120 = por %p118, %p119
    %p121 = scmp.ne.s32.totalorder %s112, %s113
    %p122 = scmp.eq.s32.totalorder %s15, 0
    %p123 = por %p121, %p122
    %p124 = scmp.ne.s32.totalorder %s112, %s113
    %p125 = scmp.eq.s32.totalorder %s16, 1
    %p126 = por %p124, %p125
    %p128 = scmp.ne.s32.totalorder %s113, %s127
    %p129 = scmp.eq.s32.totalorder %s16, 0
    %p130 = por %p128, %p129
    %s131 = ssub.s32 %s17, %s29
    %s132 = ssub.s32 %s18, %s25
    %s133 = sor.u32 %s131, %s132
    %p134 = scmp.eq.s32.totalorder %s133, 0
    %s136 = sadd.s32 %s135, 1
    %s137 = scalar_select %p134, %s135, %s136
    %p140 = pneg %p134
    %p141 = scmp.eq.s32.totalorder %s10, 1
    %p142 = por %p140, %p141
    %p143 = scmp.ne.s32.totalorder %s135, %s138
    %p144 = scmp.eq.s32.totalorder %s10, 0
    %p145 = por %p143, %p144
    %p146 = scmp.ne.s32.totalorder %s135, %s138
    %p147 = scmp.eq.s32.totalorder %s15, 1
    %p148 = por %p146, %p147
    %p149 = scmp.ne.s32.totalorder %s138, %s139
    %p150 = scmp.eq.s32.totalorder %s15, 0
    %p151 = por %p149, %p150
    %p152 = scmp.ne.s32.totalorder %s138, %s139
    %p153 = scmp.eq.s32.totalorder %s16, 1
    %p154 = por %p152, %p153
    %p156 = scmp.ne.s32.totalorder %s139, %s155
    %p157 = scmp.eq.s32.totalorder %s16, 0
    %p158 = por %p156, %p157
    %p159 = scmp.le.s32.totalorder 1, %s10
    %p160 = scmp.lt.s32.totalorder %s10, 3
    %p161 = pnand %p159, %p160
    %p162 = pneg %p161
    // Predicated region
    $region9: #{_basic_attention_impl.1} parent=5 // pred_check
      _
    $region10: #{_basic_attention_impl.1} parent=5 // pred_check_branch
      %164 = sbr.rel (%p161) target = $region12
    $region11: #{_basic_attention_impl.1} parent=5 // pred_region
      %s165 = ssub.s32 %s10, 1
      // Predicated region
      $region13: #{_basic_attention_impl.1} parent=11 // pred_check
        %p166 = pneg %p74
      $region14: #{_basic_attention_impl.1} parent=11 // pred_check_branch
        %168 = sbr.rel (%p166) target = $region16
      $region15: #{_basic_attention_impl.1} parent=11 // pred_region
        %p169 = scmp.lt.s32.totalorder %s19, 1
        %s170 = scalar_select %p169, %s19, 1
        %s171 = scalar_lea.vmem %s1, %s170
      $region16: #{_basic_attention_impl.1} parent=11 // pred_fallthru
        _
      // Predicated region
      $region17: #{_basic_attention_impl.1} parent=11 // pred_check
        %p172 = pneg %p123
      $region18: #{_basic_attention_impl.1} parent=11 // pred_check_branch
        %174 = sbr.rel (%p172) target = $region20
      $region19: #{_basic_attention_impl.1} parent=11 // pred_region
        _
      $region20: #{_basic_attention_impl.1} parent=11 // pred_fallthru
        _
    $region12: #{_basic_attention_impl.1} parent=5 // pred_fallthru
      _
    %p175 = scmp.lt.s32.totalorder %s10, 2
    // Predicated region
    $region21: #{_basic_attention_impl.1} parent=5 // pred_check
      %p176 = pneg %p175
    $region22: #{_basic_attention_impl.1} parent=5 // pred_check_branch
      %178 = sbr.rel (%p176) target = $region24
    $region23: #{_basic_attention_impl.1} parent=5 // pred_region
      // Predicated region
      $region25: #{_basic_attention_impl.1} parent=23 // pred_check
        %p179 = pneg %p42
      $region26: #{_basic_attention_impl.1} parent=23 // pred_check_branch
        %181 = sbr.rel (%p179) target = $region28
      $region27: #{_basic_attention_impl.1} parent=23 // pred_region
        %p182 = scmp.lt.s32.totalorder %s17, 1
        %s183 = scalar_select %p182, %s17, 1
        %s184 = smul.addr %s183, 16
        %s185 = smul.addr %s184, 4
        %s186 = scalar_lea.vmem %s0, %s185
      $region28: #{_basic_attention_impl.1} parent=23 // pred_fallthru
        _
      // Predicated region
      $region29: #{_basic_attention_impl.1} parent=23 // pred_check
        %p187 = pneg %p96
      $region30: #{_basic_attention_impl.1} parent=23 // pred_check_branch
        %189 = sbr.rel (%p187) target = $region32
      $region31: #{_basic_attention_impl.1} parent=23 // pred_region
        %s190 = smul.u32 2, %s18
        %p191 = scmp.lt.s32.totalorder %s17, 1
        %s192 = scalar_select %p191, %s17, 1
        %p193 = scmp.lt.s32.totalorder %s190, 1
        %s194 = scalar_select %p193, %s190, 1
        %s195 = smul.addr %s192, 2
        %s196 = sadd.s32 %s194, %s195
        %s197 = smul.addr %s196, 4
        %s198 = scalar_lea.vmem %s2, %s197
        %s199 = smul.u32 2, %s18
      $region32: #{_basic_attention_impl.1} parent=23 // pred_fallthru
        _
    $region24: #{_basic_attention_impl.1} parent=5 // pred_fallthru
      _
    %p200 = scmp.le.s32.totalorder 1, %s10
    %p201 = scmp.lt.s32.totalorder %s10, 3
    %p202 = pnand %p200, %p201
    %p203 = pneg %p202
    // Predicated region
    $region33: #{_basic_attention_impl.1} parent=5 // pred_check
      _
    $region34: #{_basic_attention_impl.1} parent=5 // pred_check_branch
      %205 = sbr.rel (%p202) target = $region36
    $region35: #{_basic_attention_impl.1} parent=5 // pred_region
      %s206 = ssub.s32 %s10, 1
      %p207 = scmp.lt.s32.totalorder %s19, 1
      %s208 = scalar_select %p207, %s19, 1
      %s209 = smul.addr %s208, 16
      %s210 = smul.addr %s209, 4
      %s211 = scalar_lea.vmem %s0, %s210
      %p212 = pneg %p48
      %p213 = pneg %p45
      %p214 = scmp.lt.s32.totalorder %s19, 1
      %s215 = scalar_select %p214, %s19, 1
      %s216 = scalar_lea.vmem %s1, %s215
      %p217 = pneg %p74
      %p218 = pneg %p71
      %s219 = smul.u32 2, %s20
      %p220 = scmp.lt.s32.totalorder %s19, 1
      %s221 = scalar_select %p220, %s19, 1
      %p222 = scmp.lt.s32.totalorder %s219, 1
      %s223 = scalar_select %p222, %s219, 1
      %s224 = smul.addr %s221, 2
      %s225 = sadd.s32 %s223, %s224
      %s226 = smul.addr %s225, 4
      %s227 = scalar_lea.vmem %s2, %s226
      %p228 = pneg %p102
      %p229 = pneg %p99
      %p230 = pneg %p123
      %p231 = pneg %p120
      %p232 = pneg %p151
      %p233 = pneg %p148
      %s234 = smul.u32 2, %s20
      %p235 = scmp.lt.s32.totalorder %s19, 1
      %s236 = scalar_select %p235, %s19, 1
      %p237 = scmp.lt.s32.totalorder %s234, 1
      %s238 = scalar_select %p237, %s234, 1
      %s239 = smul.addr %s236, 2
      %s240 = sadd.s32 %s238, %s239
      %s241 = smul.addr %s240, 8
      %s242 = scalar_lea.vmem %s4, %s241
      %p243 = scmp.lt.s32.totalorder %s19, 1
      %s244 = scalar_select %p243, %s19, 1
      %s245 = smul.addr %s244, 16
      %s246 = smul.addr %s245, 4
      %s247 = scalar_lea.vmem %s0, %s246
      %p248 = scmp.lt.s32.totalorder %s19, 1
      %s249 = scalar_select %p248, %s19, 1
      %s250 = scalar_lea.vmem %s1, %s249
      %s251 = smul.u32 2, %s20
      %p252 = scmp.lt.s32.totalorder %s19, 1
      %s253 = scalar_select %p252, %s19, 1
      %p254 = scmp.lt.s32.totalorder %s251, 1
      %s255 = scalar_select %p254, %s251, 1
      %s256 = smul.addr %s253, 2
      %s257 = sadd.s32 %s255, %s256
      %s258 = smul.addr %s257, 4
      %s259 = scalar_lea.vmem %s2, %s258
      %s260 = smul.u32 2, %s20
      %s261 = smul.u32 2, %s20
      %p262 = scmp.lt.s32.totalorder %s19, 1
      %s263 = scalar_select %p262, %s19, 1
      %p264 = scmp.lt.s32.totalorder %s261, 1
      %s265 = scalar_select %p264, %s261, 1
      %s266 = smul.addr %s263, 2
      %s267 = sadd.s32 %s265, %s266
      %s268 = smul.addr %s267, 8
      %s269 = scalar_lea.vmem %s4, %s268
      %s270 = smul.u32 2, %s20
      %v271 = vld [vmem:[%s247] sm:$0xf]
      %v272 = vld [vmem:[%s247 + $0x4] sm:$0xf]
      %v273 = vld [vmem:[%s247 + $0x8] sm:$0xf]
      %v274 = vld [vmem:[%s247 + $0xc] sm:$0xf]
      %v275 = vld [vmem:[%s247 + $0x10] sm:$0xf]
      %v276 = vld [vmem:[%s247 + $0x14] sm:$0xf]
      %v277 = vld [vmem:[%s247 + $0x18] sm:$0xf]
      %v278 = vld [vmem:[%s247 + $0x1c] sm:$0xf]
      %v279 = vld [vmem:[%s247 + $0x20] sm:$0xf]
      %v280 = vld [vmem:[%s247 + $0x24] sm:$0xf]
      %v281 = vld [vmem:[%s247 + $0x28] sm:$0xf]
      %v282 = vld [vmem:[%s247 + $0x2c] sm:$0xf]
      %v283 = vld [vmem:[%s247 + $0x30] sm:$0xf]
      %v284 = vld [vmem:[%s247 + $0x34] sm:$0xf]
      %v285 = vld [vmem:[%s247 + $0x38] sm:$0xf]
      %v286 = vld [vmem:[%s247 + $0x3c] sm:$0xf]
      %v287 = vld [vmem:[%s250] sm:$0x1]
      %v288 = vld [vmem:[%s259] sm:$0xf]
      %v289 = vld [vmem:[%s259 + $0x4] sm:$0xf]
      %v290 = vld [vmem:[%s3] sm:$0xf]
      %v291 = vld [vmem:[%s3 + $0x4] sm:$0xf]
      %v292 = vld [vmem:[%s3 + $0x8] sm:$0xf]
      %v293 = vld [vmem:[%s3 + $0xc] sm:$0xf]
      %v294 = vld [vmem:[%s3 + $0x10] sm:$0xf]
      %v295 = vld [vmem:[%s3 + $0x14] sm:$0xf]
      %v296 = vld [vmem:[%s3 + $0x18] sm:$0xf]
      %v297 = vld [vmem:[%s3 + $0x1c] sm:$0xf]
      %v298 = vld [vmem:[%s3 + $0x20] sm:$0xf]
      %v299 = vld [vmem:[%s3 + $0x24] sm:$0xf]
      %v300 = vld [vmem:[%s3 + $0x28] sm:$0xf]
      %v301 = vld [vmem:[%s3 + $0x2c] sm:$0xf]
      %v302 = vld [vmem:[%s3 + $0x30] sm:$0xf]
      %v303 = vld [vmem:[%s3 + $0x34] sm:$0xf]
      %v304 = vld [vmem:[%s3 + $0x38] sm:$0xf]
      %v305 = vld [vmem:[%s3 + $0x3c] sm:$0xf]
      %v308 = vunpack.c.l.b16 %v288
      %v309 = vunpack.c.l.b16 %v289
      %v310 = vpack.c.b16 %v309, %v308
      %v328 = vunpack.c.l.b16 %v290
      %v329 = vunpack.c.l.b16 %v291
      %v330 = vunpack.c.l.b16 %v292
      %v331 = vunpack.c.l.b16 %v293
      %v332 = vunpack.c.l.b16 %v294
      %v333 = vunpack.c.l.b16 %v295
      %v334 = vunpack.c.l.b16 %v296
      %v335 = vunpack.c.l.b16 %v297
      %v336 = vunpack.c.l.b16 %v298
      %v337 = vunpack.c.l.b16 %v299
      %v338 = vunpack.c.l.b16 %v300
      %v339 = vunpack.c.l.b16 %v301
      %v340 = vunpack.c.l.b16 %v302
      %v341 = vunpack.c.l.b16 %v303
      %v342 = vunpack.c.l.b16 %v304
      %v343 = vunpack.c.l.b16 %v305
      %v344 = vpack.c.b16 %v329, %v328
      %v345 = vpack.c.b16 %v331, %v330
      %v346 = vpack.c.b16 %v333, %v332
      %v347 = vpack.c.b16 %v335, %v334
      %v348 = vpack.c.b16 %v337, %v336
      %v349 = vpack.c.b16 %v339, %v338
      %v350 = vpack.c.b16 %v341, %v340
      %v351 = vpack.c.b16 %v343, %v342
      %360 = vmatpush.bf16.msra.mxu0 %v351
      %361 = vmatpush.bf16.msra.mxu0 %v350
      %362 = vmatpush.bf16.msra.mxu0 %v349
      %363 = vmatpush.bf16.msra.mxu0 %v348
      %364 = vmatpush.bf16.msra.mxu0 %v347
      %365 = vmatpush.bf16.msra.mxu0 %v346
      %366 = vmatpush.bf16.msra.mxu0 %v345
      %367 = vmatpush.bf16.msra.mxu0 %v344
      %368 = vmatmul.bf16.gmra.mxu0 %v310
      %v369 = vpop.f32.mrf.mxu0
      %v370 = vadd.f32 0.0, %v369
      %v371 = vpop.f32.mrf.mxu0
      %v372 = vadd.f32 0.0, %v371
      %373 = vdwg.mxu0
      %v374 = vpack.c.bf16 %v372, %v370
      %v376 = vperm.slane %v287, 0
      %v394 = vunpack.c.l.b16 %v271
      %v395 = vunpack.c.l.b16 %v272
      %v396 = vunpack.c.l.b16 %v273
      %v397 = vunpack.c.l.b16 %v274
      %v398 = vunpack.c.l.b16 %v275
      %v399 = vunpack.c.l.b16 %v276
      %v400 = vunpack.c.l.b16 %v277
      %v401 = vunpack.c.l.b16 %v278
      %v402 = vunpack.c.l.b16 %v279
      %v403 = vunpack.c.l.b16 %v280
      %v404 = vunpack.c.l.b16 %v281
      %v405 = vunpack.c.l.b16 %v282
      %v406 = vunpack.c.l.b16 %v283
      %v407 = vunpack.c.l.b16 %v284
      %v408 = vunpack.c.l.b16 %v285
      %v409 = vunpack.c.l.b16 %v286
      %v410 = vpack.c.b16 %v395, %v394
      %v411 = vpack.c.b16 %v397, %v396
      %v412 = vpack.c.b16 %v399, %v398
      %v413 = vpack.c.b16 %v401, %v400
      %v414 = vpack.c.b16 %v403, %v402
      %v415 = vpack.c.b16 %v405, %v404
      %v416 = vpack.c.b16 %v407, %v406
      %v417 = vpack.c.b16 %v409, %v408
      %426 = vmatpush.bf16.xpose.msra.mxu0 %v417
      %427 = vmatpush.bf16.xpose.msra.mxu0 %v416
      %428 = vmatpush.bf16.xpose.msra.mxu0 %v415
      %429 = vmatpush.bf16.xpose.msra.mxu0 %v414
      %430 = vmatpush.bf16.xpose.msra.mxu0 %v413
      %431 = vmatpush.bf16.xpose.msra.mxu0 %v412
      %432 = vmatpush.bf16.xpose.msra.mxu0 %v411
      %433 = vmatpush.bf16.xpose.msra.mxu0 %v410
      %434 = vmatmul.bf16.gmra.mxu0 %v374
      %v435 = vpop.f32.mrf.mxu0
      %v436 = vadd.f32 %v376, %v435
      %v437 = vpop.f32.mrf.mxu0
      %v438 = vadd.f32 %v376, %v437
      %439 = vdwg.mxu0
      %440 = vmax.xlane.f32.xlu0 %v436
      %v441 = vpop.xlane.xlu0 %440
      %442 = vmax.xlane.f32.xlu0 %v438
      %v443 = vpop.xlane.xlu0 %442
      %v444 = vsub.f32 %v436, %v441
      %v445 = vsub.f32 %v438, %v443
      %v446 = vmul.f32 %v444, 1.442695
      %v447 = vpow.pop %v446
      %v448 = vmul.f32 %v445, 1.442695
      %v449 = vpow.pop %v448
      %450 = vadd.xlane.f32.xlu0 %v447
      %v451 = vpop.xlane.xlu0 %450
      %452 = vadd.xlane.f32.xlu0 %v449
      %v453 = vpop.xlane.xlu0 %452
      %v454 = vrcp.pop %v451
      %v455 = vrcp.pop %v453
      %v456 = vmul.f32 %v447, %v454
      %v457 = vmul.f32 %v449, %v455
      %v458 = vpack.c.bf16 %v457, %v456
      %459 = vmatpush.bf16.msra.mxu0 %v417
      %460 = vmatpush.bf16.msra.mxu0 %v416
      %461 = vmatpush.bf16.msra.mxu0 %v415
      %462 = vmatpush.bf16.msra.mxu0 %v414
      %463 = vmatpush.bf16.msra.mxu0 %v413
      %464 = vmatpush.bf16.msra.mxu0 %v412
      %465 = vmatpush.bf16.msra.mxu0 %v411
      %466 = vmatpush.bf16.msra.mxu0 %v410
      %467 = vmatmul.bf16.gmra.mxu0 %v458
      %v468 = vpop.f32.mrf.mxu0
      %v469 = vadd.f32 0.0, %v468
      %v470 = vpop.f32.mrf.mxu0
      %v471 = vadd.f32 0.0, %v470
      %472 = vdwg.mxu0
      %473 = vst [vmem:[%s269] sm:$0xff] %v469
      %474 = vst [vmem:[%s269 + $0x8] sm:$0xff] %v471
      %s475 = smul.u32 2, %s20
      %p476 = scmp.lt.s32.totalorder %s19, 1
      %s477 = scalar_select %p476, %s19, 1
      %p478 = scmp.lt.s32.totalorder %s475, 1
      %s479 = scalar_select %p478, %s475, 1
      %s480 = smul.addr %s477, 2
      %s481 = sadd.s32 %s479, %s480
      %s482 = smul.addr %s481, 8
      %s483 = scalar_lea.vmem %s4, %s482
      // Predicated region
      $region37: #{_basic_attention_impl.1} parent=35 // pred_check
        %p484 = pneg %p148
      $region38: #{_basic_attention_impl.1} parent=35 // pred_check_branch
        %486 = sbr.rel (%p484) target = $region40
      $region39: #{_basic_attention_impl.1} parent=35 // pred_region
        %s487 = smul.u32 2, %s20
      $region40: #{_basic_attention_impl.1} parent=35 // pred_fallthru
        _
    $region36: #{_basic_attention_impl.1} parent=5 // pred_fallthru
      _
    %p488 = scmp.le.s32.totalorder 2, %s10
    // Predicated region
    $region41: #{_basic_attention_impl.1} parent=5 // pred_check
      %p489 = pneg %p488
    $region42: #{_basic_attention_impl.1} parent=5 // pred_check_branch
      %491 = sbr.rel (%p489) target = $region44
    $region43: #{_basic_attention_impl.1} parent=5 // pred_region
      %s492 = ssub.s32 %s10, 2
      // Predicated region
      $region45: #{_basic_attention_impl.1} parent=43 // pred_check
        %p493 = pneg %p154
      $region46: #{_basic_attention_impl.1} parent=43 // pred_check_branch
        %495 = sbr.rel (%p493) target = $region48
      $region47: #{_basic_attention_impl.1} parent=43 // pred_region
        %s496 = smul.u32 2, %s22
        %p497 = scmp.lt.s32.totalorder %s21, 1
        %s498 = scalar_select %p497, %s21, 1
        %p499 = scmp.lt.s32.totalorder %s496, 1
        %s500 = scalar_select %p499, %s496, 1
        %s501 = smul.addr %s498, 2
        %s502 = sadd.s32 %s500, %s501
        %s503 = smul.addr %s502, 8
        %s504 = scalar_lea.vmem %s4, %s503
      $region48: #{_basic_attention_impl.1} parent=43 // pred_fallthru
        _
    $region44: #{_basic_attention_impl.1} parent=5 // pred_fallthru
      _
  $region6: #{_basic_attention_impl.1} parent=0 // loop_footer
    %s14 = sadd.s32 1, %s10
  $region7: #{_basic_attention_impl.1} parent=0 // loop_footer_branch
    %9 = sbr.rel target = $region3
  $region8: #{_basic_attention_impl.1} parent=0 // loop_exit
    _

// kernel: _basic_attention_impl.1
$region0: #{_basic_attention_impl.1}
  #allocation0 [shape = 'u32[]', space=smem, size = 0x4, offset = 0x4, fixed_abs, tag = 'smem constant byte address 0x4 - core index']
  #allocation1 [shape = 'u32[72,128]{1,0:T(1,128)}', space=vmem, size = 0x9000, scoped, tag = 'internal scratch']
  %s0 = inlined_call_operand.vmem [shape: bf16[2,128,128], index: 0, kind: input, shape index: {}]
  %s1 = inlined_call_operand.vmem [shape: f32[2,1,128], index: 1, kind: input, shape index: {}]
  %s2 = inlined_call_operand.vmem [shape: bf16[2,16,128], index: 2, kind: input, shape index: {}]
  %s3 = inlined_call_operand.vmem [shape: bf16[128,128], index: 3, kind: input, shape index: {}]
  %s4 = inlined_call_operand.vmem [shape: f32[2,16,128], index: 4, kind: output, shape index: {}]
  %s5 = sld [smem:[#allocation0]]
  $region49: #{_basic_attention_impl.1} parent=0
    _
  %s7 = ssub.s32 1, %s5
  %s8 = scalar_select 0, %s7, %s5
  loop: start=0, step=1, limit=4
  $region2: #{_basic_attention_impl.1} parent=0 // loop_pre_header
    _
  $region3: #{_basic_attention_impl.1} parent=0 // loop_header
    %s10 = sphi 0, %s14
    %p11 = scmp.ge.s32.totalorder %s10, 4
    %s17 = sphi 0, %s29
    %s18 = sphi 0, %s25
    %s19 = sphi 0, %s17
    %s20 = sphi 0, %s18
    %s21 = sphi 0, %s19
    %s22 = sphi 0, %s20
    %s32 = sphi 0, %s34
    %s35 = sphi 0, %s32
    %s36 = sphi 0, %s35
    %s52 = sphi 0, %s36
    %s58 = sphi 0, %s60
    %s61 = sphi 0, %s58
    %s62 = sphi 0, %s61
    %s78 = sphi 0, %s62
    %s86 = sphi 0, %s88
    %s89 = sphi 0, %s86
    %s90 = sphi 0, %s89
    %s106 = sphi 0, %s90
    %s110 = sphi 0, %s110
    %s112 = sphi 0, %s110
    %s113 = sphi 0, %s112
    %s127 = sphi 0, %s113
    %s135 = sphi 0, %s137
    %s138 = sphi 0, %s135
    %s139 = sphi 0, %s138
    %s155 = sphi 0, %s139
  $region4: #{_basic_attention_impl.1} parent=0 // loop_header_branch
    %13 = sbr.rel (%p11) target = $region8
  $region5: #{_basic_attention_impl.1} parent=0 // loop_body
    %s15 = ssub.s32 %s10, 1
    %s16 = ssub.s32 %s10, 2
    %s23 = sadd.s32 1, %s18
    %p24 = scmp.ge.s32.totalorder %s23, 1
    %s25 = scalar_select %p24, 0, %s23
    %s26 = sadd.s32 1, %s17
    %s27 = scalar_select %p24, %s26, %s17
    %p28 = scmp.ge.s32.totalorder %s27, 2
    %s29 = scalar_select %p28, 0, %s27
    %s30 = ssub.s32 %s17, %s29
    %p31 = scmp.eq.s32.totalorder %s30, 0
    %s33 = sadd.s32 %s32, 1
    %s34 = scalar_select %p31, %s32, %s33
    %p37 = pneg %p31
    %p38 = scmp.eq.s32.totalorder %s10, 1
    %p39 = por %p37, %p38
    %p40 = scmp.ne.s32.totalorder %s32, %s35
    %p41 = scmp.eq.s32.totalorder %s10, 0
    %p42 = por %p40, %p41
    %p43 = scmp.ne.s32.totalorder %s32, %s35
    %p44 = scmp.eq.s32.totalorder %s15, 1
    %p45 = por %p43, %p44
    %p46 = scmp.ne.s32.totalorder %s35, %s36
    %p47 = scmp.eq.s32.totalorder %s15, 0
    %p48 = por %p46, %p47
    %p49 = scmp.ne.s32.totalorder %s35, %s36
    %p50 = scmp.eq.s32.totalorder %s16, 1
    %p51 = por %p49, %p50
    %p53 = scmp.ne.s32.totalorder %s36, %s52
    %p54 = scmp.eq.s32.totalorder %s16, 0
    %p55 = por %p53, %p54
    %s56 = ssub.s32 %s17, %s29
    %p57 = scmp.eq.s32.totalorder %s56, 0
    %s59 = sadd.s32 %s58, 1
    %s60 = scalar_select %p57, %s58, %s59
    %p63 = pneg %p57
    %p64 = scmp.eq.s32.totalorder %s10, 1
    %p65 = por %p63, %p64
    %p66 = scmp.ne.s32.totalorder %s58, %s61
    %p67 = scmp.eq.s32.totalorder %s10, 0
    %p68 = por %p66, %p67
    %p69 = scmp.ne.s32.totalorder %s58, %s61
    %p70 = scmp.eq.s32.totalorder %s15, 1
    %p71 = por %p69, %p70
    %p72 = scmp.ne.s32.totalorder %s61, %s62
    %p73 = scmp.eq.s32.totalorder %s15, 0
    %p74 = por %p72, %p73
    %p75 = scmp.ne.s32.totalorder %s61, %s62
    %p76 = scmp.eq.s32.totalorder %s16, 1
    %p77 = por %p75, %p76
    %p79 = scmp.ne.s32.totalorder %s62, %s78
    %p80 = scmp.eq.s32.totalorder %s16, 0
    %p81 = por %p79, %p80
    %s82 = ssub.s32 %s17, %s29
    %s83 = ssub.s32 %s18, %s25
    %s84 = sor.u32 %s82, %s83
    %p85 = scmp.eq.s32.totalorder %s84, 0
    %s87 = sadd.s32 %s86, 1
    %s88 = scalar_select %p85, %s86, %s87
    %p91 = pneg %p85
    %p92 = scmp.eq.s32.totalorder %s10, 1
    %p93 = por %p91, %p92
    %p94 = scmp.ne.s32.totalorder %s86, %s89
    %p95 = scmp.eq.s32.totalorder %s10, 0
    %p96 = por %p94, %p95
    %p97 = scmp.ne.s32.totalorder %s86, %s89
    %p98 = scmp.eq.s32.totalorder %s15, 1
    %p99 = por %p97, %p98
    %p100 = scmp.ne.s32.totalorder %s89, %s90
    %p101 = scmp.eq.s32.totalorder %s15, 0
    %p102 = por %p100, %p101
    %p103 = scmp.ne.s32.totalorder %s89, %s90
    %p104 = scmp.eq.s32.totalorder %s16, 1
    %p105 = por %p103, %p104
    %p107 = scmp.ne.s32.totalorder %s90, %s106
    %p108 = scmp.eq.s32.totalorder %s16, 0
    %p109 = por %p107, %p108
    %s111 = sadd.s32 %s110, 1
    %p114 = scmp.eq.s32.totalorder %s10, 1
    %p115 = scmp.ne.s32.totalorder %s110, %s112
    %p116 = scmp.eq.s32.totalorder %s10, 0
    %p117 = por %p115, %p116
    %p118 = scmp.ne.s32.totalorder %s110, %s112
    %p119 = scmp.eq.s32.totalorder %s15, 1
    %p120 = por %p118, %p119
    %p121 = scmp.ne.s32.totalorder %s112, %s113
    %p122 = scmp.eq.s32.totalorder %s15, 0
    %p123 = por %p121, %p122
    %p124 = scmp.ne.s32.totalorder %s112, %s113
    %p125 = scmp.eq.s32.totalorder %s16, 1
    %p126 = por %p124, %p125
    %p128 = scmp.ne.s32.totalorder %s113, %s127
    %p129 = scmp.eq.s32.totalorder %s16, 0
    %p130 = por %p128, %p129
    %s131 = ssub.s32 %s17, %s29
    %s132 = ssub.s32 %s18, %s25
    %s133 = sor.u32 %s131, %s132
    %p134 = scmp.eq.s32.totalorder %s133, 0
    %s136 = sadd.s32 %s135, 1
    %s137 = scalar_select %p134, %s135, %s136
    %p140 = pneg %p134
    %p141 = scmp.eq.s32.totalorder %s10, 1
    %p142 = por %p140, %p141
    %p143 = scmp.ne.s32.totalorder %s135, %s138
    %p144 = scmp.eq.s32.totalorder %s10, 0
    %p145 = por %p143, %p144
    %p146 = scmp.ne.s32.totalorder %s135, %s138
    %p147 = scmp.eq.s32.totalorder %s15, 1
    %p148 = por %p146, %p147
    %p149 = scmp.ne.s32.totalorder %s138, %s139
    %p150 = scmp.eq.s32.totalorder %s15, 0
    %p151 = por %p149, %p150
    %p152 = scmp.ne.s32.totalorder %s138, %s139
    %p153 = scmp.eq.s32.totalorder %s16, 1
    %p154 = por %p152, %p153
    %p156 = scmp.ne.s32.totalorder %s139, %s155
    %p157 = scmp.eq.s32.totalorder %s16, 0
    %p158 = por %p156, %p157
    %p159 = scmp.le.s32.totalorder 1, %s10
    %p160 = scmp.lt.s32.totalorder %s10, 3
    %p161 = pnand %p159, %p160
    %p162 = pneg %p161
    // Predicated region
    $region9: #{_basic_attention_impl.1} parent=5 // pred_check
      _
    $region10: #{_basic_attention_impl.1} parent=5 // pred_check_branch
      %164 = sbr.rel (%p161) target = $region12
    $region11: #{_basic_attention_impl.1} parent=5 // pred_region
      %s165 = ssub.s32 %s10, 1
      // Predicated region
      $region13: #{_basic_attention_impl.1} parent=11 // pred_check
        %p166 = pneg %p123
      $region14: #{_basic_attention_impl.1} parent=11 // pred_check_branch
        %168 = sbr.rel (%p166) target = $region16
      $region15: #{_basic_attention_impl.1} parent=11 // pred_region
        _
      $region16: #{_basic_attention_impl.1} parent=11 // pred_fallthru
        _
    $region12: #{_basic_attention_impl.1} parent=5 // pred_fallthru
      _
    %p169 = scmp.lt.s32.totalorder %s10, 2
    // Predicated region
    $region17: #{_basic_attention_impl.1} parent=5 // pred_check
      %p170 = pneg %p169
    $region18: #{_basic_attention_impl.1} parent=5 // pred_check_branch
      %172 = sbr.rel (%p170) target = $region20
    $region19: #{_basic_attention_impl.1} parent=5 // pred_region
      // Predicated region
      $region21: #{_basic_attention_impl.1} parent=19 // pred_check
        %p173 = pneg %p42
      $region22: #{_basic_attention_impl.1} parent=19 // pred_check_branch
        %175 = sbr.rel (%p173) target = $region24
      $region23: #{_basic_attention_impl.1} parent=19 // pred_region
        %p176 = scmp.lt.s32.totalorder %s17, 1
        %s177 = scalar_select %p176, %s17, 1
        %s178 = smul.addr %s177, 16
        %s179 = smul.addr %s178, 4
        %s180 = scalar_lea.vmem %s0, %s179
      $region24: #{_basic_attention_impl.1} parent=19 // pred_fallthru
        _
      // Predicated region
      $region25: #{_basic_attention_impl.1} parent=19 // pred_check
        %p181 = pneg %p68
      $region26: #{_basic_attention_impl.1} parent=19 // pred_check_branch
        %183 = sbr.rel (%p181) target = $region28
      $region27: #{_basic_attention_impl.1} parent=19 // pred_region
        %p184 = scmp.lt.s32.totalorder %s17, 1
        %s185 = scalar_select %p184, %s17, 1
        %s186 = scalar_lea.vmem %s1, %s185
      $region28: #{_basic_attention_impl.1} parent=19 // pred_fallthru
        _
      // Predicated region
      $region29: #{_basic_attention_impl.1} parent=19 // pred_check
        %p187 = pneg %p96
      $region30: #{_basic_attention_impl.1} parent=19 // pred_check_branch
        %189 = sbr.rel (%p187) target = $region32
      $region31: #{_basic_attention_impl.1} parent=19 // pred_region
        %s190 = smul.u32 2, %s18
        %p191 = scmp.lt.s32.totalorder %s17, 1
        %s192 = scalar_select %p191, %s17, 1
        %p193 = scmp.lt.s32.totalorder %s190, 1
        %s194 = scalar_select %p193, %s190, 1
        %s195 = smul.addr %s192, 2
        %s196 = sadd.s32 %s194, %s195
        %s197 = smul.addr %s196, 4
        %s198 = scalar_lea.vmem %s2, %s197
        %s199 = smul.u32 2, %s18
      $region32: #{_basic_attention_impl.1} parent=19 // pred_fallthru
        _
    $region20: #{_basic_attention_impl.1} parent=5 // pred_fallthru
      _
    %p200 = scmp.le.s32.totalorder 1, %s10
    %p201 = scmp.lt.s32.totalorder %s10, 3
    %p202 = pnand %p200, %p201
    %p203 = pneg %p202
    // Predicated region
    $region33: #{_basic_attention_impl.1} parent=5 // pred_check
      _
    $region34: #{_basic_attention_impl.1} parent=5 // pred_check_branch
      %205 = sbr.rel (%p202) target = $region36
    $region35: #{_basic_attention_impl.1} parent=5 // pred_region
      %s206 = ssub.s32 %s10, 1
      %p207 = scmp.lt.s32.totalorder %s19, 1
      %s208 = scalar_select %p207, %s19, 1
      %s209 = smul.addr %s208, 16
      %s210 = smul.addr %s209, 4
      %s211 = scalar_lea.vmem %s0, %s210
      %p212 = pneg %p48
      %p213 = pneg %p45
      %p214 = scmp.lt.s32.totalorder %s19, 1
      %s215 = scalar_select %p214, %s19, 1
      %s216 = scalar_lea.vmem %s1, %s215
      %p217 = pneg %p74
      %p218 = pneg %p71
      %s219 = smul.u32 2, %s20
      %p220 = scmp.lt.s32.totalorder %s19, 1
      %s221 = scalar_select %p220, %s19, 1
      %p222 = scmp.lt.s32.totalorder %s219, 1
      %s223 = scalar_select %p222, %s219, 1
      %s224 = smul.addr %s221, 2
      %s225 = sadd.s32 %s223, %s224
      %s226 = smul.addr %s225, 4
      %s227 = scalar_lea.vmem %s2, %s226
      %p228 = pneg %p102
      %p229 = pneg %p99
      %p230 = pneg %p123
      %p231 = pneg %p120
      %p232 = pneg %p151
      %p233 = pneg %p148
      %s234 = smul.u32 2, %s20
      %p235 = scmp.lt.s32.totalorder %s19, 1
      %s236 = scalar_select %p235, %s19, 1
      %p237 = scmp.lt.s32.totalorder %s234, 1
      %s238 = scalar_select %p237, %s234, 1
      %s239 = smul.addr %s236, 2
      %s240 = sadd.s32 %s238, %s239
      %s241 = smul.addr %s240, 8
      %s242 = scalar_lea.vmem %s4, %s241
      %p243 = scmp.lt.s32.totalorder %s19, 1
      %s244 = scalar_select %p243, %s19, 1
      %s245 = smul.addr %s244, 16
      %s246 = smul.addr %s245, 4
      %s247 = scalar_lea.vmem %s0, %s246
      %p248 = scmp.lt.s32.totalorder %s19, 1
      %s249 = scalar_select %p248, %s19, 1
      %s250 = scalar_lea.vmem %s1, %s249
      %s251 = smul.u32 2, %s20
      %p252 = scmp.lt.s32.totalorder %s19, 1
      %s253 = scalar_select %p252, %s19, 1
      %p254 = scmp.lt.s32.totalorder %s251, 1
      %s255 = scalar_select %p254, %s251, 1
      %s256 = smul.addr %s253, 2
      %s257 = sadd.s32 %s255, %s256
      %s258 = smul.addr %s257, 4
      %s259 = scalar_lea.vmem %s2, %s258
      %s260 = smul.u32 2, %s20
      %s261 = smul.u32 2, %s20
      %p262 = scmp.lt.s32.totalorder %s19, 1
      %s263 = scalar_select %p262, %s19, 1
      %p264 = scmp.lt.s32.totalorder %s261, 1
      %s265 = scalar_select %p264, %s261, 1
      %s266 = smul.addr %s263, 2
      %s267 = sadd.s32 %s265, %s266
      %s268 = smul.addr %s267, 8
      %s269 = scalar_lea.vmem %s4, %s268
      %s270 = smul.u32 2, %s20
      %v271 = vld [vmem:[%s247] sm:$0xf]
      %v272 = vld [vmem:[%s247 + $0x4] sm:$0xf]
      %v273 = vld [vmem:[%s247 + $0x8] sm:$0xf]
      %v274 = vld [vmem:[%s247 + $0xc] sm:$0xf]
      %v275 = vld [vmem:[%s247 + $0x10] sm:$0xf]
      %v276 = vld [vmem:[%s247 + $0x14] sm:$0xf]
      %v277 = vld [vmem:[%s247 + $0x18] sm:$0xf]
      %v278 = vld [vmem:[%s247 + $0x1c] sm:$0xf]
      %v279 = vld [vmem:[%s247 + $0x20] sm:$0xf]
      %v280 = vld [vmem:[%s247 + $0x24] sm:$0xf]
      %v281 = vld [vmem:[%s247 + $0x28] sm:$0xf]
      %v282 = vld [vmem:[%s247 + $0x2c] sm:$0xf]
      %v283 = vld [vmem:[%s247 + $0x30] sm:$0xf]
      %v284 = vld [vmem:[%s247 + $0x34] sm:$0xf]
      %v285 = vld [vmem:[%s247 + $0x38] sm:$0xf]
      %v286 = vld [vmem:[%s247 + $0x3c] sm:$0xf]
      %v287 = vld [vmem:[%s250] sm:$0x1]
      %v288 = vld [vmem:[%s259] sm:$0xf]
      %v289 = vld [vmem:[%s259 + $0x4] sm:$0xf]
      %v290 = vld [vmem:[%s3] sm:$0xf]
      %v291 = vld [vmem:[%s3 + $0x4] sm:$0xf]
      %v292 = vld [vmem:[%s3 + $0x8] sm:$0xf]
      %v293 = vld [vmem:[%s3 + $0xc] sm:$0xf]
      %v294 = vld [vmem:[%s3 + $0x10] sm:$0xf]
      %v295 = vld [vmem:[%s3 + $0x14] sm:$0xf]
      %v296 = vld [vmem:[%s3 + $0x18] sm:$0xf]
      %v297 = vld [vmem:[%s3 + $0x1c] sm:$0xf]
      %v298 = vld [vmem:[%s3 + $0x20] sm:$0xf]
      %v299 = vld [vmem:[%s3 + $0x24] sm:$0xf]
      %v300 = vld [vmem:[%s3 + $0x28] sm:$0xf]
      %v301 = vld [vmem:[%s3 + $0x2c] sm:$0xf]
      %v302 = vld [vmem:[%s3 + $0x30] sm:$0xf]
      %v303 = vld [vmem:[%s3 + $0x34] sm:$0xf]
      %v304 = vld [vmem:[%s3 + $0x38] sm:$0xf]
      %v305 = vld [vmem:[%s3 + $0x3c] sm:$0xf]
      %v308 = vunpack.c.l.b16 %v288
      %v309 = vunpack.c.l.b16 %v289
      %v310 = vpack.c.b16 %v309, %v308
      %v328 = vunpack.c.l.b16 %v290
      %v329 = vunpack.c.l.b16 %v291
      %v330 = vunpack.c.l.b16 %v292
      %v331 = vunpack.c.l.b16 %v293
      %v332 = vunpack.c.l.b16 %v294
      %v333 = vunpack.c.l.b16 %v295
      %v334 = vunpack.c.l.b16 %v296
      %v335 = vunpack.c.l.b16 %v297
      %v336 = vunpack.c.l.b16 %v298
      %v337 = vunpack.c.l.b16 %v299
      %v338 = vunpack.c.l.b16 %v300
      %v339 = vunpack.c.l.b16 %v301
      %v340 = vunpack.c.l.b16 %v302
      %v341 = vunpack.c.l.b16 %v303
      %v342 = vunpack.c.l.b16 %v304
      %v343 = vunpack.c.l.b16 %v305
      %v344 = vpack.c.b16 %v329, %v328
      %v345 = vpack.c.b16 %v331, %v330
      %v346 = vpack.c.b16 %v333, %v332
      %v347 = vpack.c.b16 %v335, %v334
      %v348 = vpack.c.b16 %v337, %v336
      %v349 = vpack.c.b16 %v339, %v338
      %v350 = vpack.c.b16 %v341, %v340
      %v351 = vpack.c.b16 %v343, %v342
      %360 = vmatpush.bf16.msra.mxu0 %v351
      %361 = vmatpush.bf16.msra.mxu0 %v350
      %362 = vmatpush.bf16.msra.mxu0 %v349
      %363 = vmatpush.bf16.msra.mxu0 %v348
      %364 = vmatpush.bf16.msra.mxu0 %v347
      %365 = vmatpush.bf16.msra.mxu0 %v346
      %366 = vmatpush.bf16.msra.mxu0 %v345
      %367 = vmatpush.bf16.msra.mxu0 %v344
      %368 = vmatmul.bf16.gmra.mxu0 %v310
      %v369 = vpop.f32.mrf.mxu0
      %v370 = vadd.f32 0.0, %v369
      %v371 = vpop.f32.mrf.mxu0
      %v372 = vadd.f32 0.0, %v371
      %373 = vdwg.mxu0
      %v374 = vpack.c.bf16 %v372, %v370
      %v376 = vperm.slane %v287, 0
      %v394 = vunpack.c.l.b16 %v271
      %v395 = vunpack.c.l.b16 %v272
      %v396 = vunpack.c.l.b16 %v273
      %v397 = vunpack.c.l.b16 %v274
      %v398 = vunpack.c.l.b16 %v275
      %v399 = vunpack.c.l.b16 %v276
      %v400 = vunpack.c.l.b16 %v277
      %v401 = vunpack.c.l.b16 %v278
      %v402 = vunpack.c.l.b16 %v279
      %v403 = vunpack.c.l.b16 %v280
      %v404 = vunpack.c.l.b16 %v281
      %v405 = vunpack.c.l.b16 %v282
      %v406 = vunpack.c.l.b16 %v283
      %v407 = vunpack.c.l.b16 %v284
      %v408 = vunpack.c.l.b16 %v285
      %v409 = vunpack.c.l.b16 %v286
      %v410 = vpack.c.b16 %v395, %v394
      %v411 = vpack.c.b16 %v397, %v396
      %v412 = vpack.c.b16 %v399, %v398
      %v413 = vpack.c.b16 %v401, %v400
      %v414 = vpack.c.b16 %v403, %v402
      %v415 = vpack.c.b16 %v405, %v404
      %v416 = vpack.c.b16 %v407, %v406
      %v417 = vpack.c.b16 %v409, %v408
      %426 = vmatpush.bf16.xpose.msra.mxu0 %v417
      %427 = vmatpush.bf16.xpose.msra.mxu0 %v416
      %428 = vmatpush.bf16.xpose.msra.mxu0 %v415
      %429 = vmatpush.bf16.xpose.msra.mxu0 %v414
      %430 = vmatpush.bf16.xpose.msra.mxu0 %v413
      %431 = vmatpush.bf16.xpose.msra.mxu0 %v412
      %432 = vmatpush.bf16.xpose.msra.mxu0 %v411
      %433 = vmatpush.bf16.xpose.msra.mxu0 %v410
      %434 = vmatmul.bf16.gmra.mxu0 %v374
      %v435 = vpop.f32.mrf.mxu0
      %v436 = vadd.f32 %v376, %v435
      %v437 = vpop.f32.mrf.mxu0
      %v438 = vadd.f32 %v376, %v437
      %439 = vdwg.mxu0
      %440 = vmax.xlane.f32.xlu0 %v436
      %v441 = vpop.xlane.xlu0 %440
      %442 = vmax.xlane.f32.xlu0 %v438
      %v443 = vpop.xlane.xlu0 %442
      %v444 = vsub.f32 %v436, %v441
      %v445 = vsub.f32 %v438, %v443
      %v446 = vmul.f32 %v444, 1.442695
      %v447 = vpow.pop %v446
      %v448 = vmul.f32 %v445, 1.442695
      %v449 = vpow.pop %v448
      %450 = vadd.xlane.f32.xlu0 %v447
      %v451 = vpop.xlane.xlu0 %450
      %452 = vadd.xlane.f32.xlu0 %v449
      %v453 = vpop.xlane.xlu0 %452
      %v454 = vrcp.pop %v451
      %v455 = vrcp.pop %v453
      %v456 = vmul.f32 %v447, %v454
      %v457 = vmul.f32 %v449, %v455
      %v458 = vpack.c.bf16 %v457, %v456
      %459 = vmatpush.bf16.msra.mxu0 %v417
      %460 = vmatpush.bf16.msra.mxu0 %v416
      %461 = vmatpush.bf16.msra.mxu0 %v415
      %462 = vmatpush.bf16.msra.mxu0 %v414
      %463 = vmatpush.bf16.msra.mxu0 %v413
      %464 = vmatpush.bf16.msra.mxu0 %v412
      %465 = vmatpush.bf16.msra.mxu0 %v411
      %466 = vmatpush.bf16.msra.mxu0 %v410
      %467 = vmatmul.bf16.gmra.mxu0 %v458
      %v468 = vpop.f32.mrf.mxu0
      %v469 = vadd.f32 0.0, %v468
      %v470 = vpop.f32.mrf.mxu0
      %v471 = vadd.f32 0.0, %v470
      %472 = vdwg.mxu0
      %473 = vst [vmem:[%s269] sm:$0xff] %v469
      %474 = vst [vmem:[%s269 + $0x8] sm:$0xff] %v471
      %s475 = smul.u32 2, %s20
      %p476 = scmp.lt.s32.totalorder %s19, 1
      %s477 = scalar_select %p476, %s19, 1
      %p478 = scmp.lt.s32.totalorder %s475, 1
      %s479 = scalar_select %p478, %s475, 1
      %s480 = smul.addr %s477, 2
      %s481 = sadd.s32 %s479, %s480
      %s482 = smul.addr %s481, 8
      %s483 = scalar_lea.vmem %s4, %s482
      // Predicated region
      $region37: #{_basic_attention_impl.1} parent=35 // pred_check
        %p484 = pneg %p148
      $region38: #{_basic_attention_impl.1} parent=35 // pred_check_branch
        %486 = sbr.rel (%p484) target = $region40
      $region39: #{_basic_attention_impl.1} parent=35 // pred_region
        %s487 = smul.u32 2, %s20
      $region40: #{_basic_attention_impl.1} parent=35 // pred_fallthru
        _
    $region36: #{_basic_attention_impl.1} parent=5 // pred_fallthru
      _
    %p488 = scmp.le.s32.totalorder 2, %s10
    // Predicated region
    $region41: #{_basic_attention_impl.1} parent=5 // pred_check
      %p489 = pneg %p488
    $region42: #{_basic_attention_impl.1} parent=5 // pred_check_branch
      %491 = sbr.rel (%p489) target = $region44
    $region43: #{_basic_attention_impl.1} parent=5 // pred_region
      %s492 = ssub.s32 %s10, 2
      // Predicated region
      $region45: #{_basic_attention_impl.1} parent=43 // pred_check
        %p493 = pneg %p154
      $region46: #{_basic_attention_impl.1} parent=43 // pred_check_branch
        %495 = sbr.rel (%p493) target = $region48
      $region47: #{_basic_attention_impl.1} parent=43 // pred_region
        %s496 = smul.u32 2, %s22
        %p497 = scmp.lt.s32.totalorder %s21, 1
        %s498 = scalar_select %p497, %s21, 1
        %p499 = scmp.lt.s32.totalorder %s496, 1
        %s500 = scalar_select %p499, %s496, 1
        %s501 = smul.addr %s498, 2
        %s502 = sadd.s32 %s500, %s501
        %s503 = smul.addr %s502, 8
        %s504 = scalar_lea.vmem %s4, %s503
      $region48: #{_basic_attention_impl.1} parent=43 // pred_fallthru
        _
    $region44: #{_basic_attention_impl.1} parent=5 // pred_fallthru
      _
  $region6: #{_basic_attention_impl.1} parent=0 // loop_footer
    %s14 = sadd.s32 1, %s10
  $region7: #{_basic_attention_impl.1} parent=0 // loop_footer_branch
    %9 = sbr.rel target = $region3
  $region8: #{_basic_attention_impl.1} parent=0 // loop_exit
    _

</llo_original>
